<compile_context>
chip_gen: v7x
topology: tpu7x:2x2x1
jax: 0.10.0
libtpu: 0.0.40
codegen_flags: <defaults>
</compile_context>

<pallas_src>
import functools
import math

import jax
import jax.numpy as jnp
from jax import lax
from jax.experimental import pallas as pl
from jax.experimental.pallas import tpu as pltpu

_MASK_FILL = float(jnp.finfo(jnp.float32).min)


def _round_up(x, m):
    return (x + m - 1) // m * m


def _head_group_size(n_head, d_k):
    """Number of heads processed per grid step.

    G*d_k must equal the full feature dim or be a multiple of 128 so every
    BlockSpec lane dim satisfies the (8,128) constraint; G is capped to bound
    the in-kernel per-head unroll.
    """
    n_feat = n_head * d_k
    if n_feat <= 128:
        return n_head                      # whole feature dim in one group
    for g in range(min(n_head, 16), 0, -1):
        gd = g * d_k
        if n_head % g == 0 and gd % 128 == 0 and gd <= 512:
            return g
    return n_head                          # fallback: full feature dim block


def _pick_blocks(T1, T2, blk_t1, blk_t2):
    t2p8 = _round_up(T2, 8)
    if blk_t2 is None:
        # Single KV block (single-pass softmax) for the short sequences
        # typical of vae_npvc; flash path with modest KV blocks otherwise.
        blk_t2 = t2p8 if t2p8 <= 512 else 128
    else:
        blk_t2 = _round_up(min(blk_t2, t2p8), 8)
    if blk_t1 is None:
        # Large blk_t1 cuts K/V re-streaming (K/V re-read T1/blk_t1 times per
        # head group); cap so the per-head (blk_t1, blk_t2) f32 score tile
        # stays around half the vreg file to bound spills.
        cap = (128 * 1024) // (4 * blk_t2)
        blk_t1 = 8
        for cand in (512, 256, 128, 64, 32, 16, 8):
            if cand <= cap:
                blk_t1 = cand
                break
        blk_t1 = min(blk_t1, _round_up(T1, 8))
    else:
        blk_t1 = _round_up(min(blk_t1, _round_up(T1, 8)), 8)
    return blk_t1, blk_t2


def _attn_single_block_kernel(lens_ref, q_ref, k_ref, v_ref, o_ref,
                              *, n_group, d_k, t2):
    """One (batch, head-group, T1-block) step; whole (padded) KV in one block."""
    b = pl.program_id(0)
    length = lens_ref[b]
    col = lax.broadcasted_iota(jnp.int32, (1, t2), 1)
    keep = col < length                       # (1, t2): padded keys masked out
    keep_f = keep.astype(jnp.float32)

    q = q_ref[...]                            # (blk_t1, G*d_k), q pre-scaled
    k = k_ref[...]                            # (t2, G*d_k)
    v = v_ref[...]                            # (t2, G*d_k)

    for g in range(n_group):                  # static unroll over heads
        sl = slice(g * d_k, (g + 1) * d_k)
        s = lax.dot_general(q[:, sl], k[:, sl], (((1,), (1,)), ((), ())),
                            preferred_element_type=jnp.float32)
        s = jnp.where(keep, s, _MASK_FILL)    # torch masked_fill(mask==0, min)
        m = jnp.max(s, axis=-1, keepdims=True)
        p = jnp.exp(s - m) * keep_f           # post-softmax masked_fill(0.0)
        l = jnp.sum(p, axis=-1, keepdims=True)
        l = jnp.where(l == 0.0, 1.0, l)       # fully-masked rows -> exact 0
        ctx = lax.dot_general(p.astype(v.dtype), v[:, sl],
                              (((1,), (0,)), ((), ())),
                              preferred_element_type=jnp.float32)
        # exact divide (pl.reciprocal(approx=True) is too coarse for 1e-4)
        o_ref[:, sl] = (ctx / l).astype(o_ref.dtype)


def _flash_attn_kernel(lens_ref, q_ref, k_ref, v_ref, o_ref,
                       m_sc, l_sc, acc_sc, *, n_group, d_k, blk_t2):
    """Flash path: grid axis 3 loops over KV blocks with an online softmax."""
    b = pl.program_id(0)
    j = pl.program_id(3)
    length = lens_ref[b]

    @pl.when(j == 0)
    def _init():
        m_sc[...] = jnp.full_like(m_sc, -jnp.inf)
        l_sc[...] = jnp.zeros_like(l_sc)
        acc_sc[...] = jnp.zeros_like(acc_sc)

    # Skip compute for fully padded KV blocks (their DMA is also elided by the
    # clamped index_map below).
    @pl.when(j * blk_t2 < length)
    def _body():
        q = q_ref[...]                        # (blk_t1, G*d_k)
        k = k_ref[...]                        # (blk_t2, G*d_k)
        v = v_ref[...]                        # (blk_t2, G*d_k)
        col = j * blk_t2 + lax.broadcasted_iota(jnp.int32, (1, blk_t2), 1)
        keep = col < length
        keep_f = keep.astype(jnp.float32)
        for g in range(n_group):              # static unroll over heads
            sl = slice(g * d_k, (g + 1) * d_k)
            s = lax.dot_general(q[:, sl], k[:, sl], (((1,), (1,)), ((), ())),
                                preferred_element_type=jnp.float32)
            s = jnp.where(keep, s, _MASK_FILL)
            m_prev = m_sc[:, g:g + 1]
            m_new = jnp.maximum(m_prev, jnp.max(s, axis=-1, keepdims=True))
            alpha = jnp.exp(m_prev - m_new)
            p = jnp.exp(s - m_new) * keep_f
            l_sc[:, g:g + 1] = alpha * l_sc[:, g:g + 1] + jnp.sum(
                p, axis=-1, keepdims=True)
            acc_sc[:, sl] = alpha * acc_sc[:, sl] + lax.dot_general(
                p.astype(v.dtype), v[:, sl], (((1,), (0,)), ((), ())),
                preferred_element_type=jnp.float32)
            m_sc[:, g:g + 1] = m_new

    @pl.when(j == pl.num_programs(3) - 1)
    def _finalize():
        for g in range(n_group):
            sl = slice(g * d_k, (g + 1) * d_k)
            l = l_sc[:, g:g + 1]
            l = jnp.where(l == 0.0, 1.0, l)   # fully-masked rows -> exact 0
            o_ref[:, sl] = (acc_sc[:, sl] / l).astype(o_ref.dtype)


def _attention(q, k, v, lens, *, n_head, blk_t1=None, blk_t2=None):
    """q (pre-scaled), k, v: (B, T, n_feat); lens: (B,) int32.  Returns
    the attention context in (B, T1, n_feat) layout."""
    B, T1, n_feat = q.shape
    T2 = k.shape[1]
    d_k = n_feat // n_head
    G = _head_group_size(n_head, d_k)
    n_hg = n_head // G
    gd = G * d_k

    blk_t1, blk_t2 = _pick_blocks(T1, T2, blk_t1, blk_t2)
    T1p = _round_up(T1, blk_t1)
    T2p = _round_up(T2, blk_t2)
    if T1p != T1:
        q = jnp.pad(q, ((0, 0), (0, T1p - T1), (0, 0)))
    if T2p != T2:
        k = jnp.pad(k, ((0, 0), (0, T2p - T2), (0, 0)))
        v = jnp.pad(v, ((0, 0), (0, T2p - T2), (0, 0)))
    n_i = T1p // blk_t1
    n_j = T2p // blk_t2

    elem = jnp.dtype(q.dtype).itemsize
    cost = pl.CostEstimate(
        flops=4 * B * n_head * T1p * T2p * d_k,          # QK^T + PV
        transcendentals=B * n_head * T1p * T2p,          # exp
        bytes_accessed=int(elem * (q.size + n_i * (k.size + v.size)
                                   + B * T1p * n_feat)),
    )
    cparams_kwargs = dict(vmem_limit_bytes=32 * 1024 * 1024)

    if n_j == 1:
        # Single-pass softmax: no T2 grid axis, no m/l scratch, no rescaling.
        kernel = functools.partial(_attn_single_block_kernel,
                                   n_group=G, d_k=d_k, t2=T2p)
        out = pl.pallas_call(
            kernel,
            out_shape=jax.ShapeDtypeStruct((B, T1p, n_feat), q.dtype),
            grid_spec=pltpu.PrefetchScalarGridSpec(
                num_scalar_prefetch=1,
                grid=(B, n_hg, n_i),
                in_specs=[
                    pl.BlockSpec((None, blk_t1, gd),
                                 lambda b, hg, i, lens_ref: (b, i, hg)),   # q
                    pl.BlockSpec((None, T2p, gd),
                                 lambda b, hg, i, lens_ref: (b, 0, hg)),   # k
                    pl.BlockSpec((None, T2p, gd),
                                 lambda b, hg, i, lens_ref: (b, 0, hg)),   # v
                ],
                out_specs=pl.BlockSpec((None, blk_t1, gd),
                                       lambda b, hg, i, lens_ref: (b, i, hg)),
            ),
            compiler_params=pltpu.CompilerParams(
                dimension_semantics=("parallel", "parallel", "parallel"),
                **cparams_kwargs),
            cost_estimate=cost,
        )(lens, q, k, v)
    else:
        kernel = functools.partial(_flash_attn_kernel,
                                   n_group=G, d_k=d_k, blk_t2=blk_t2)

        def kv_index(b, hg, i, j, lens_ref):
            # Clamp fully padded KV blocks to the last valid block so their
            # DMAs are elided (the body is pl.when-skipped for them anyway).
            last = jnp.maximum((lens_ref[b] + blk_t2 - 1) // blk_t2 - 1, 0)
            return (b, jnp.minimum(j, last), hg)

        out = pl.pallas_call(
            kernel,
            out_shape=jax.ShapeDtypeStruct((B, T1p, n_feat), q.dtype),
            grid_spec=pltpu.PrefetchScalarGridSpec(
                num_scalar_prefetch=1,
                grid=(B, n_hg, n_i, n_j),
                in_specs=[
                    pl.BlockSpec((None, blk_t1, gd),
                                 lambda b, hg, i, j, lens_ref: (b, i, hg)),  # q
                    pl.BlockSpec((None, blk_t2, gd), kv_index),              # k
                    pl.BlockSpec((None, blk_t2, gd), kv_index),              # v
                ],
                out_specs=pl.BlockSpec((None, blk_t1, gd),
                                       lambda b, hg, i, j, lens_ref: (b, i, hg)),
                scratch_shapes=[
                    pltpu.VMEM((blk_t1, G), jnp.float32),    # running max m
                    pltpu.VMEM((blk_t1, G), jnp.float32),    # running denom l
                    pltpu.VMEM((blk_t1, gd), jnp.float32),   # running numerator
                ],
            ),
            compiler_params=pltpu.CompilerParams(
                dimension_semantics=("parallel", "parallel", "parallel",
                                     "arbitrary"),
                **cparams_kwargs),
            cost_estimate=cost,
        )(lens, q, k, v)

    if T1p != T1:
        out = out[:, :T1, :]
    return out


def multi_headed_attention(query, key, value, mask, params, *, n_head,
                           blk_t1=None, blk_t2=None):
    """Forward of MultiHeadedAttention.

    query: (B, T1, q_dim), key: (B, T2, k_dim), value: (B, T2, v_dim),
    mask:  (B, 1, T2) (nonzero == keep) or None.
    params: wq/wk/wv/wo are (in_dim, n_feat) (torch weights pre-transposed),
            bq/bk/bv/bo are (1, n_feat).
    """
    B, T1, Dq = query.shape
    _, T2, Dk = key.shape
    Dv = value.shape[-1]
    n_feat = params["wq"].shape[1]
    assert n_feat % n_head == 0
    d_k = n_feat // n_head

    # Q/K/V projections as full-batch XLA GEMMs: full MXU tiles, weights stay
    # out of the attention kernel's VMEM budget.
    q = query.reshape(B * T1, Dq) @ params["wq"] + params["bq"]
    k = key.reshape(B * T2, Dk) @ params["wk"] + params["bk"]
    v = value.reshape(B * T2, Dv) @ params["wv"] + params["bv"]

    # Fold 1/sqrt(d_k) into q (one multiply over T1*n_feat instead of a divide
    # over H*T1*T2 score elements inside the kernel).
    q = q * jnp.asarray(1.0 / math.sqrt(d_k), q.dtype)

    # Stay in (B, T, n_feat) layout: heads are split inside the kernel via the
    # feature axis, so no head-major transposes (and no context transpose).
    q = q.reshape(B, T1, n_feat)
    k = k.reshape(B, T2, n_feat)
    v = v.reshape(B, T2, n_feat)

    # Per-batch key lengths from the (B, 1, T2) padding mask (prefix mask),
    # scalar-prefetched into SMEM by the kernel.
    # TODO(synk): arbitrary non-prefix / per-query masks would need the mask
    # tensor streamed into the kernel instead of scalar-prefetched lengths.
    if mask is None:
        lens = jnp.full((B,), T2, dtype=jnp.int32)
    else:
        keep2d = (mask.reshape(B, -1, T2)[:, 0, :] != 0)
        lens = jnp.sum(keep2d.astype(jnp.int32), axis=-1)

    ctx = _attention(q, k, v, lens, n_head=n_head, blk_t1=blk_t1, blk_t2=blk_t2)

    # Merge heads is free (already (B, T1, n_feat)); output projection as one
    # full-batch GEMM.  Dropout(p=0.0) is an identity and is not emitted.
    out = ctx.reshape(B * T1, n_feat) @ params["wo"] + params["bo"]
    return out.reshape(B, T1, n_feat).astype(query.dtype)


def _reference(query, key, value, mask, params, *, n_head):
    """Pure-JAX reference mirroring the PyTorch module."""
    B, T1, _ = query.shape
    _, T2, _ = key.shape
    n_feat = params["wq"].shape[1]
    d_k = n_feat // n_head

    q = query @ params["wq"] + params["bq"]
    k = key @ params["wk"] + params["bk"]
    v = value @ params["wv"] + params["bv"]
    q = q.reshape(B, T1, n_head, d_k).transpose(0, 2, 1, 3)
    k = k.reshape(B, T2, n_head, d_k).transpose(0, 2, 1, 3)
    v = v.reshape(B, T2, n_head, d_k).transpose(0, 2, 1, 3)
    scores = jnp.einsum("bhqd,bhkd->bhqk", q, k) / math.sqrt(d_k)
    if mask is not None:
        m = (mask[:, None, :, :] == 0)                 # (B,1,1,T2)
        scores = jnp.where(m, _MASK_FILL, scores)
        attn = jax.nn.softmax(scores, axis=-1)
        attn = jnp.where(m, 0.0, attn)
    else:
        attn = jax.nn.softmax(scores, axis=-1)
    x = jnp.einsum("bhqk,bhkd->bhqd", attn, v)
    x = x.transpose(0, 2, 1, 3).reshape(B, T1, n_feat)
    return x @ params["wo"] + params["bo"]


if __name__ == "__main__":
    def lin_init(kw, kb, in_dim, out_dim):
        bound = 1.0 / math.sqrt(in_dim)
        # torch Linear stores (out, in); we pre-transpose to (in, out).
        w = jax.random.uniform(kw, (in_dim, out_dim), jnp.float32, -bound, bound)
        b = jax.random.uniform(kb, (1, out_dim), jnp.float32, -bound, bound)
        return w, b

    def run_case(B, T1, T2, q_dim, k_dim, v_dim, n_head, n_feat, lens):
        ks = jax.random.split(jax.random.PRNGKey(0), 11)
        wq, bq = lin_init(ks[0], ks[1], q_dim, n_feat)
        wk, bk = lin_init(ks[2], ks[3], k_dim, n_feat)
        wv, bv = lin_init(ks[4], ks[5], v_dim, n_feat)
        wo, bo = lin_init(ks[6], ks[7], n_feat, n_feat)
        params = dict(wq=wq, bq=bq, wk=wk, bk=bk, wv=wv, bv=bv, wo=wo, bo=bo)

        query = jax.random.normal(ks[8], (B, T1, q_dim), jnp.float32)
        key_t = jax.random.normal(ks[9], (B, T2, k_dim), jnp.float32)
        value = jax.random.normal(ks[10], (B, T2, v_dim), jnp.float32)

        lens_a = jnp.asarray(lens, jnp.int32)
        mask = (jnp.arange(T2)[None, None, :] < lens_a[:, None, None]).astype(jnp.int32)

        out = multi_headed_attention(query, key_t, value, mask, params,
                                     n_head=n_head)
        out = jax.block_until_ready(out)

        ref = _reference(query, key_t, value, mask, params, n_head=n_head)
        assert out.shape == (B, T1, n_feat)
        err = float(jnp.max(jnp.abs(out - ref)))
        assert jnp.allclose(out, ref, atol=1e-4, rtol=1e-4), err

    # Small shapes from the module's forward (single KV block path).
    run_case(B=2, T1=8, T2=8, q_dim=16, k_dim=12, v_dim=20,
             n_head=4, n_feat=32, lens=[8, 5])
    # Typical vae_npvc lengths: single-pass softmax, padded keys, one batch
    # element fully masked to exercise the zero-row guard.
    run_case(B=2, T1=256, T2=384, q_dim=16, k_dim=12, v_dim=20,
             n_head=4, n_feat=32, lens=[300, 0])
    # Long-KV flash path: multiple KV blocks, pl.when block skipping + clamped
    # K/V DMAs for the padded tail and the fully-masked batch element.
    run_case(B=2, T1=128, T2=1024, q_dim=16, k_dim=12, v_dim=20,
             n_head=4, n_feat=32, lens=[700, 0])

    print("KERNEL_OK")
</pallas_src>

<mosaic_0001>
module attributes {stable_mosaic.version = 11 : i64} {
  func.func @_attn_single_block_kernel(%arg0: i32, %arg1: i32, %arg2: i32, %arg3: memref<2xi32, #tpu.memory_space<smem>>, %arg4: memref<1x8x32xf32, #tpu.memory_space<vmem>>, %arg5: memref<1x8x32xf32, #tpu.memory_space<vmem>>, %arg6: memref<1x8x32xf32, #tpu.memory_space<vmem>>, %arg7: memref<1x8x32xf32, #tpu.memory_space<vmem>>) attributes {dimension_semantics = [#tpu.dimension_semantics<parallel>, #tpu.dimension_semantics<parallel>, #tpu.dimension_semantics<parallel>], iteration_bounds = array<i64: 2, 1, 1>, scalar_prefetch = 1 : i64, scratch_operands = 0 : i64, tpu.core_type = #tpu.core_type<tc>, window_params = [{transform_indices = @transform_0, window_bounds = array<i64: 1, 8, 32>}, {transform_indices = @transform_1, window_bounds = array<i64: 1, 8, 32>}, {transform_indices = @transform_2, window_bounds = array<i64: 1, 8, 32>}, {transform_indices = @transform_3, window_bounds = array<i64: 1, 8, 32>}]} {
    %0 = arith.index_cast %arg0 : i32 to index
    %1 = memref.load %arg3[%0] : memref<2xi32, #tpu.memory_space<smem>>
    %2 = tpu.iota {dimensions = array<i32: 1>} : vector<1x8xi32>
    %3 = vector.broadcast %1 : i32 to vector<1x8xi32>
    %4 = arith.cmpi slt, %2, %3 : vector<1x8xi32>
    %5 = arith.extui %4 : vector<1x8xi1> to vector<1x8xi32>
    %6 = arith.sitofp %5 : vector<1x8xi32> to vector<1x8xf32>
    %c0 = arith.constant 0 : index
    %c0_0 = arith.constant 0 : index
    %c0_1 = arith.constant 0 : index
    %7 = vector.load %arg4[%c0, %c0_0, %c0_1] : memref<1x8x32xf32, #tpu.memory_space<vmem>>, vector<1x8x32xf32>
    %8 = vector.shape_cast %7 : vector<1x8x32xf32> to vector<8x32xf32>
    %c0_2 = arith.constant 0 : index
    %c0_3 = arith.constant 0 : index
    %c0_4 = arith.constant 0 : index
    %9 = vector.load %arg5[%c0_2, %c0_3, %c0_4] : memref<1x8x32xf32, #tpu.memory_space<vmem>>, vector<1x8x32xf32>
    %10 = vector.shape_cast %9 : vector<1x8x32xf32> to vector<8x32xf32>
    %c0_5 = arith.constant 0 : index
    %c0_6 = arith.constant 0 : index
    %c0_7 = arith.constant 0 : index
    %11 = vector.load %arg6[%c0_5, %c0_6, %c0_7] : memref<1x8x32xf32, #tpu.memory_space<vmem>>, vector<1x8x32xf32>
    %12 = vector.shape_cast %11 : vector<1x8x32xf32> to vector<8x32xf32>
    %13 = vector.extract_strided_slice %8 {offsets = [0, 0], sizes = [8, 8], strides = [1, 1]} : vector<8x32xf32> to vector<8x8xf32>
    %14 = vector.extract_strided_slice %10 {offsets = [0, 0], sizes = [8, 8], strides = [1, 1]} : vector<8x32xf32> to vector<8x8xf32>
    %cst = arith.constant dense<0.000000e+00> : vector<8x8xf32>
    %15 = tpu.matmul %13, %14, %cst {dimension_numbers = #tpu.dot_dimension_numbers<[1], [1], [0], [0], [0, 0, 1, 0], [], []>} : vector<8x8xf32>, vector<8x8xf32>, vector<8x8xf32> -> vector<8x8xf32>
    %cst_8 = arith.constant -3.40282347E+38 : f32
    %16 = vector.shape_cast %4 : vector<1x8xi1> to vector<1x8xi1>
    %17 = vector.broadcast %16 : vector<1x8xi1> to vector<8x8xi1>
    %18 = vector.broadcast %cst_8 : f32 to vector<8x8xf32>
    %19 = arith.select %17, %15, %18 : vector<8x8xi1>, vector<8x8xf32>
    %cst_9 = arith.constant dense<0xFF800000> : vector<8xf32>
    %20 = vector.multi_reduction <maximumf>, %19, %cst_9 [1] : vector<8x8xf32> to vector<8xf32>
    %21 = vector.shape_cast %20 : vector<8xf32> to vector<8x1xf32>
    %22 = vector.broadcast %21 : vector<8x1xf32> to vector<8x8xf32>
    %23 = arith.subf %19, %22 : vector<8x8xf32>
    %24 = math.exp %23 : vector<8x8xf32>
    %25 = vector.broadcast %6 : vector<1x8xf32> to vector<8x8xf32>
    %26 = arith.mulf %24, %25 : vector<8x8xf32>
    %cst_10 = arith.constant dense<0.000000e+00> : vector<8xf32>
    %27 = vector.multi_reduction <add>, %26, %cst_10 [1] : vector<8x8xf32> to vector<8xf32>
    %28 = vector.shape_cast %27 : vector<8xf32> to vector<8x1xf32>
    %cst_11 = arith.constant 0.000000e+00 : f32
    %29 = vector.broadcast %cst_11 : f32 to vector<8x1xf32>
    %30 = arith.cmpf oeq, %28, %29 : vector<8x1xf32>
    %cst_12 = arith.constant 1.000000e+00 : f32
    %31 = vector.broadcast %cst_12 : f32 to vector<8x1xf32>
    %32 = arith.select %30, %31, %28 : vector<8x1xi1>, vector<8x1xf32>
    %33 = vector.extract_strided_slice %12 {offsets = [0, 0], sizes = [8, 8], strides = [1, 1]} : vector<8x32xf32> to vector<8x8xf32>
    %cst_13 = arith.constant dense<0.000000e+00> : vector<8x8xf32>
    %34 = tpu.matmul %26, %33, %cst_13 {dimension_numbers = #tpu.dot_dimension_numbers<[1], [0], [0], [1], [0, 0, 1, 1], [], []>} : vector<8x8xf32>, vector<8x8xf32>, vector<8x8xf32> -> vector<8x8xf32>
    %35 = vector.broadcast %32 : vector<8x1xf32> to vector<8x8xf32>
    %36 = arith.divf %34, %35 : vector<8x8xf32>
    %c0_14 = arith.constant 0 : index
    %c0_15 = arith.constant 0 : index
    %c0_16 = arith.constant 0 : index
    %37 = vector.load %arg7[%c0_14, %c0_15, %c0_16] : memref<1x8x32xf32, #tpu.memory_space<vmem>>, vector<1x8x8xf32>
    %38 = vector.shape_cast %37 : vector<1x8x8xf32> to vector<8x8xf32>
    %39 = vector.shape_cast %36 : vector<8x8xf32> to vector<1x8x8xf32>
    tpu.vector_store %arg7[%c0_14, %c0_15, %c0_16], %39 {strides = array<i32>} : memref<1x8x32xf32, #tpu.memory_space<vmem>>, vector<1x8x8xf32>,
    %40 = vector.extract_strided_slice %8 {offsets = [0, 8], sizes = [8, 8], strides = [1, 1]} : vector<8x32xf32> to vector<8x8xf32>
    %41 = vector.extract_strided_slice %10 {offsets = [0, 8], sizes = [8, 8], strides = [1, 1]} : vector<8x32xf32> to vector<8x8xf32>
    %cst_17 = arith.constant dense<0.000000e+00> : vector<8x8xf32>
    %42 = tpu.matmul %40, %41, %cst_17 {dimension_numbers = #tpu.dot_dimension_numbers<[1], [1], [0], [0], [0, 0, 1, 0], [], []>} : vector<8x8xf32>, vector<8x8xf32>, vector<8x8xf32> -> vector<8x8xf32>
    %cst_18 = arith.constant -3.40282347E+38 : f32
    %43 = vector.shape_cast %4 : vector<1x8xi1> to vector<1x8xi1>
    %44 = vector.broadcast %43 : vector<1x8xi1> to vector<8x8xi1>
    %45 = vector.broadcast %cst_18 : f32 to vector<8x8xf32>
    %46 = arith.select %44, %42, %45 : vector<8x8xi1>, vector<8x8xf32>
    %cst_19 = arith.constant dense<0xFF800000> : vector<8xf32>
    %47 = vector.multi_reduction <maximumf>, %46, %cst_19 [1] : vector<8x8xf32> to vector<8xf32>
    %48 = vector.shape_cast %47 : vector<8xf32> to vector<8x1xf32>
    %49 = vector.broadcast %48 : vector<8x1xf32> to vector<8x8xf32>
    %50 = arith.subf %46, %49 : vector<8x8xf32>
    %51 = math.exp %50 : vector<8x8xf32>
    %52 = vector.broadcast %6 : vector<1x8xf32> to vector<8x8xf32>
    %53 = arith.mulf %51, %52 : vector<8x8xf32>
    %cst_20 = arith.constant dense<0.000000e+00> : vector<8xf32>
    %54 = vector.multi_reduction <add>, %53, %cst_20 [1] : vector<8x8xf32> to vector<8xf32>
    %55 = vector.shape_cast %54 : vector<8xf32> to vector<8x1xf32>
    %cst_21 = arith.constant 0.000000e+00 : f32
    %56 = vector.broadcast %cst_21 : f32 to vector<8x1xf32>
    %57 = arith.cmpf oeq, %55, %56 : vector<8x1xf32>
    %cst_22 = arith.constant 1.000000e+00 : f32
    %58 = vector.broadcast %cst_22 : f32 to vector<8x1xf32>
    %59 = arith.select %57, %58, %55 : vector<8x1xi1>, vector<8x1xf32>
    %60 = vector.extract_strided_slice %12 {offsets = [0, 8], sizes = [8, 8], strides = [1, 1]} : vector<8x32xf32> to vector<8x8xf32>
    %cst_23 = arith.constant dense<0.000000e+00> : vector<8x8xf32>
    %61 = tpu.matmul %53, %60, %cst_23 {dimension_numbers = #tpu.dot_dimension_numbers<[1], [0], [0], [1], [0, 0, 1, 1], [], []>} : vector<8x8xf32>, vector<8x8xf32>, vector<8x8xf32> -> vector<8x8xf32>
    %62 = vector.broadcast %59 : vector<8x1xf32> to vector<8x8xf32>
    %63 = arith.divf %61, %62 : vector<8x8xf32>
    %c0_24 = arith.constant 0 : index
    %c0_25 = arith.constant 0 : index
    %c8 = arith.constant 8 : index
    %64 = vector.load %arg7[%c0_24, %c0_25, %c8] : memref<1x8x32xf32, #tpu.memory_space<vmem>>, vector<1x8x8xf32>
    %65 = vector.shape_cast %64 : vector<1x8x8xf32> to vector<8x8xf32>
    %66 = vector.shape_cast %63 : vector<8x8xf32> to vector<1x8x8xf32>
    tpu.vector_store %arg7[%c0_24, %c0_25, %c8], %66 {strides = array<i32>} : memref<1x8x32xf32, #tpu.memory_space<vmem>>, vector<1x8x8xf32>,
    %67 = vector.extract_strided_slice %8 {offsets = [0, 16], sizes = [8, 8], strides = [1, 1]} : vector<8x32xf32> to vector<8x8xf32>
    %68 = vector.extract_strided_slice %10 {offsets = [0, 16], sizes = [8, 8], strides = [1, 1]} : vector<8x32xf32> to vector<8x8xf32>
    %cst_26 = arith.constant dense<0.000000e+00> : vector<8x8xf32>
    %69 = tpu.matmul %67, %68, %cst_26 {dimension_numbers = #tpu.dot_dimension_numbers<[1], [1], [0], [0], [0, 0, 1, 0], [], []>} : vector<8x8xf32>, vector<8x8xf32>, vector<8x8xf32> -> vector<8x8xf32>
    %cst_27 = arith.constant -3.40282347E+38 : f32
    %70 = vector.shape_cast %4 : vector<1x8xi1> to vector<1x8xi1>
    %71 = vector.broadcast %70 : vector<1x8xi1> to vector<8x8xi1>
    %72 = vector.broadcast %cst_27 : f32 to vector<8x8xf32>
    %73 = arith.select %71, %69, %72 : vector<8x8xi1>, vector<8x8xf32>
    %cst_28 = arith.constant dense<0xFF800000> : vector<8xf32>
    %74 = vector.multi_reduction <maximumf>, %73, %cst_28 [1] : vector<8x8xf32> to vector<8xf32>
    %75 = vector.shape_cast %74 : vector<8xf32> to vector<8x1xf32>
    %76 = vector.broadcast %75 : vector<8x1xf32> to vector<8x8xf32>
    %77 = arith.subf %73, %76 : vector<8x8xf32>
    %78 = math.exp %77 : vector<8x8xf32>
    %79 = vector.broadcast %6 : vector<1x8xf32> to vector<8x8xf32>
    %80 = arith.mulf %78, %79 : vector<8x8xf32>
    %cst_29 = arith.constant dense<0.000000e+00> : vector<8xf32>
    %81 = vector.multi_reduction <add>, %80, %cst_29 [1] : vector<8x8xf32> to vector<8xf32>
    %82 = vector.shape_cast %81 : vector<8xf32> to vector<8x1xf32>
    %cst_30 = arith.constant 0.000000e+00 : f32
    %83 = vector.broadcast %cst_30 : f32 to vector<8x1xf32>
    %84 = arith.cmpf oeq, %82, %83 : vector<8x1xf32>
    %cst_31 = arith.constant 1.000000e+00 : f32
    %85 = vector.broadcast %cst_31 : f32 to vector<8x1xf32>
    %86 = arith.select %84, %85, %82 : vector<8x1xi1>, vector<8x1xf32>
    %87 = vector.extract_strided_slice %12 {offsets = [0, 16], sizes = [8, 8], strides = [1, 1]} : vector<8x32xf32> to vector<8x8xf32>
    %cst_32 = arith.constant dense<0.000000e+00> : vector<8x8xf32>
    %88 = tpu.matmul %80, %87, %cst_32 {dimension_numbers = #tpu.dot_dimension_numbers<[1], [0], [0], [1], [0, 0, 1, 1], [], []>} : vector<8x8xf32>, vector<8x8xf32>, vector<8x8xf32> -> vector<8x8xf32>
    %89 = vector.broadcast %86 : vector<8x1xf32> to vector<8x8xf32>
    %90 = arith.divf %88, %89 : vector<8x8xf32>
    %c0_33 = arith.constant 0 : index
    %c0_34 = arith.constant 0 : index
    %c16 = arith.constant 16 : index
    %91 = vector.load %arg7[%c0_33, %c0_34, %c16] : memref<1x8x32xf32, #tpu.memory_space<vmem>>, vector<1x8x8xf32>
    %92 = vector.shape_cast %91 : vector<1x8x8xf32> to vector<8x8xf32>
    %93 = vector.shape_cast %90 : vector<8x8xf32> to vector<1x8x8xf32>
    tpu.vector_store %arg7[%c0_33, %c0_34, %c16], %93 {strides = array<i32>} : memref<1x8x32xf32, #tpu.memory_space<vmem>>, vector<1x8x8xf32>,
    %94 = vector.extract_strided_slice %8 {offsets = [0, 24], sizes = [8, 8], strides = [1, 1]} : vector<8x32xf32> to vector<8x8xf32>
    %95 = vector.extract_strided_slice %10 {offsets = [0, 24], sizes = [8, 8], strides = [1, 1]} : vector<8x32xf32> to vector<8x8xf32>
    %cst_35 = arith.constant dense<0.000000e+00> : vector<8x8xf32>
    %96 = tpu.matmul %94, %95, %cst_35 {dimension_numbers = #tpu.dot_dimension_numbers<[1], [1], [0], [0], [0, 0, 1, 0], [], []>} : vector<8x8xf32>, vector<8x8xf32>, vector<8x8xf32> -> vector<8x8xf32>
    %cst_36 = arith.constant -3.40282347E+38 : f32
    %97 = vector.shape_cast %4 : vector<1x8xi1> to vector<1x8xi1>
    %98 = vector.broadcast %97 : vector<1x8xi1> to vector<8x8xi1>
    %99 = vector.broadcast %cst_36 : f32 to vector<8x8xf32>
    %100 = arith.select %98, %96, %99 : vector<8x8xi1>, vector<8x8xf32>
    %cst_37 = arith.constant dense<0xFF800000> : vector<8xf32>
    %101 = vector.multi_reduction <maximumf>, %100, %cst_37 [1] : vector<8x8xf32> to vector<8xf32>
    %102 = vector.shape_cast %101 : vector<8xf32> to vector<8x1xf32>
    %103 = vector.broadcast %102 : vector<8x1xf32> to vector<8x8xf32>
    %104 = arith.subf %100, %103 : vector<8x8xf32>
    %105 = math.exp %104 : vector<8x8xf32>
    %106 = vector.broadcast %6 : vector<1x8xf32> to vector<8x8xf32>
    %107 = arith.mulf %105, %106 : vector<8x8xf32>
    %cst_38 = arith.constant dense<0.000000e+00> : vector<8xf32>
    %108 = vector.multi_reduction <add>, %107, %cst_38 [1] : vector<8x8xf32> to vector<8xf32>
    %109 = vector.shape_cast %108 : vector<8xf32> to vector<8x1xf32>
    %cst_39 = arith.constant 0.000000e+00 : f32
    %110 = vector.broadcast %cst_39 : f32 to vector<8x1xf32>
    %111 = arith.cmpf oeq, %109, %110 : vector<8x1xf32>
    %cst_40 = arith.constant 1.000000e+00 : f32
    %112 = vector.broadcast %cst_40 : f32 to vector<8x1xf32>
    %113 = arith.select %111, %112, %109 : vector<8x1xi1>, vector<8x1xf32>
    %114 = vector.extract_strided_slice %12 {offsets = [0, 24], sizes = [8, 8], strides = [1, 1]} : vector<8x32xf32> to vector<8x8xf32>
    %cst_41 = arith.constant dense<0.000000e+00> : vector<8x8xf32>
    %115 = tpu.matmul %107, %114, %cst_41 {dimension_numbers = #tpu.dot_dimension_numbers<[1], [0], [0], [1], [0, 0, 1, 1], [], []>} : vector<8x8xf32>, vector<8x8xf32>, vector<8x8xf32> -> vector<8x8xf32>
    %116 = vector.broadcast %113 : vector<8x1xf32> to vector<8x8xf32>
    %117 = arith.divf %115, %116 : vector<8x8xf32>
    %c0_42 = arith.constant 0 : index
    %c0_43 = arith.constant 0 : index
    %c24 = arith.constant 24 : index
    %118 = vector.load %arg7[%c0_42, %c0_43, %c24] : memref<1x8x32xf32, #tpu.memory_space<vmem>>, vector<1x8x8xf32>
    %119 = vector.shape_cast %118 : vector<1x8x8xf32> to vector<8x8xf32>
    %120 = vector.shape_cast %117 : vector<8x8xf32> to vector<1x8x8xf32>
    tpu.vector_store %arg7[%c0_42, %c0_43, %c24], %120 {strides = array<i32>} : memref<1x8x32xf32, #tpu.memory_space<vmem>>, vector<1x8x8xf32>,
    return
  }
  func.func @transform_0(%arg0: i32, %arg1: i32, %arg2: i32, %arg3: memref<2xi32, #tpu.memory_space<smem>>) -> (i32, i32, i32) {
    %c0_i32 = arith.constant 0 : i32
    return %arg0, %arg2, %arg1 : i32, i32, i32
  }
  func.func @transform_1(%arg0: i32, %arg1: i32, %arg2: i32, %arg3: memref<2xi32, #tpu.memory_space<smem>>) -> (i32, i32, i32) {
    %c0_i32 = arith.constant 0 : i32
    %c0_i32_0 = arith.constant 0 : i32
    return %arg0, %c0_i32, %arg1 : i32, i32, i32
  }
  func.func @transform_2(%arg0: i32, %arg1: i32, %arg2: i32, %arg3: memref<2xi32, #tpu.memory_space<smem>>) -> (i32, i32, i32) {
    %c0_i32 = arith.constant 0 : i32
    %c0_i32_0 = arith.constant 0 : i32
    return %arg0, %c0_i32, %arg1 : i32, i32, i32
  }
  func.func @transform_3(%arg0: i32, %arg1: i32, %arg2: i32, %arg3: memref<2xi32, #tpu.memory_space<smem>>) -> (i32, i32, i32) {
    %c0_i32 = arith.constant 0 : i32
    return %arg0, %arg2, %arg1 : i32, i32, i32
  }
}

</mosaic_0001>

<llo_original>
// kernel: tpu_custom_call.1
$region0: #{tpu_custom_call.1}
  #allocation0 [shape = 'u32[]', space=smem, size = 0x4, offset = 0x4, fixed_abs, tag = 'smem constant byte address 0x4 - core index']
  #allocation1 [shape = 'u32[144,128]{1,0:T(1,128)}', space=vmem, size = 0x12000, scoped, tag = 'internal scratch']
  #allocation2 [shape = 's32[1]{0}', space=sflag, size = 0x4, scoped, tag = 'scoped memory for tpu_custom_call.1']
  #allocation3 [shape = 'u8[512]{0}', space=smem, size = 0x200, scoped, tag = 'prefetched SMEM operand 0']
  %s0 = inlined_call_operand.hbm [shape: s32[2], index: 0, kind: input, shape index: {}]
  %s1 = inlined_call_operand.hbm [shape: f32[2,8,32], index: 1, kind: input, shape index: {}]
  %s2 = inlined_call_operand.hbm [shape: f32[2,8,32], index: 2, kind: input, shape index: {}]
  %s3 = inlined_call_operand.hbm [shape: f32[2,8,32], index: 3, kind: input, shape index: {}]
  %s4 = inlined_call_operand.hbm [shape: f32[2,8,32], index: 4, kind: output, shape index: {}]
  %s5 = sld [smem:[#allocation0]]
  $region57: #{tpu_custom_call.1} parent=0
    _
  %s7 = ssub.s32 1, %s5
  %s8 = scalar_select 0, %s7, %s5
  %10 = dma.hbm_to_smem %s0, 16, [#allocation3], [#allocation2]
  %11 = dma.done [#allocation2], 16
  %12 = sfence
  $region1: #{tpu_custom_call.1} parent=0
    #allocation4 [shape = 'u8[8192]{0}', space=vmem, size = 0x2000, scoped, tag = 'input window, operand 1']
    #allocation5 [shape = 's32[2]{0}', space=sflag, size = 0x8, scoped, tag = 'scoped memory for tpu_custom_call.1']
    #allocation6 [shape = 's32[2]{0}', space=sflag, size = 0x8, scoped, tag = 'scoped memory for tpu_custom_call.1']
    #allocation7 [shape = 'u8[8192]{0}', space=vmem, size = 0x2000, scoped, tag = 'input window, operand 2']
    #allocation8 [shape = 's32[2]{0}', space=sflag, size = 0x8, scoped, tag = 'scoped memory for tpu_custom_call.1']
    #allocation9 [shape = 'u8[8192]{0}', space=vmem, size = 0x2000, scoped, tag = 'input window, operand 3']
    #allocation10 [shape = 'u8[8192]{0}', space=vmem, size = 0x2000, scoped, tag = 'output window, operand 0']
    %13 = vsyncpa [#allocation5], 0
    %s14 = scalar_lea.sflag [#allocation5], 1
    %15 = vsyncpa %s14, 0
    %16 = vsyncpa [#allocation8], 0
    %s17 = scalar_lea.sflag [#allocation8], 1
    %18 = vsyncpa %s17, 0
    %19 = vsyncpa [#allocation6], 0
    %s20 = scalar_lea.sflag [#allocation6], 1
    %21 = vsyncpa %s20, 0
    loop: start=0, step=1, limit=4
    $region2: #{tpu_custom_call.1} parent=1 // loop_pre_header
      _
    $region3: #{tpu_custom_call.1} parent=1 // loop_header
      %s23 = sphi 0, %s27
      %p24 = scmp.ge.s32.totalorder %s23, 4
      %s30 = sphi 0, %s49
      %s31 = sphi 0, %s45
      %s32 = sphi 0, %s41
      %s33 = sphi 0, %s30
      %s34 = sphi 0, %s31
      %s35 = sphi 0, %s32
      %s36 = sphi 0, %s33
      %s37 = sphi 0, %s34
      %s38 = sphi 0, %s35
      %s56 = sphi 0, %s58
      %s59 = sphi 0, %s56
      %s60 = sphi 0, %s59
      %s76 = sphi 0, %s60
      %s84 = sphi 0, %s86
      %s87 = sphi 0, %s84
      %s88 = sphi 0, %s87
      %s104 = sphi 0, %s88
      %s112 = sphi 0, %s114
      %s115 = sphi 0, %s112
      %s116 = sphi 0, %s115
      %s132 = sphi 0, %s116
      %s142 = sphi 0, %s144
      %s145 = sphi 0, %s142
      %s146 = sphi 0, %s145
      %s162 = sphi 0, %s146
    $region4: #{tpu_custom_call.1} parent=1 // loop_header_branch
      %26 = sbr.rel (%p24) target = $region8
    $region5: #{tpu_custom_call.1} parent=1 // loop_body
      %s28 = ssub.s32 %s23, 1
      %s29 = ssub.s32 %s23, 2
      %s39 = sadd.s32 1, %s32
      %p40 = scmp.ge.s32.totalorder %s39, 1
      %s41 = scalar_select %p40, 0, %s39
      %s42 = sadd.s32 1, %s31
      %s43 = scalar_select %p40, %s42, %s31
      %p44 = scmp.ge.s32.totalorder %s43, 1
      %s45 = scalar_select %p44, 0, %s43
      %s46 = sadd.s32 1, %s30
      %s47 = scalar_select %p44, %s46, %s30
      %p48 = scmp.ge.s32.totalorder %s47, 2
      %s49 = scalar_select %p48, 0, %s47
      %s50 = ssub.s32 %s30, %s49
      %s51 = ssub.s32 %s32, %s41
      %s52 = sor.u32 %s50, %s51
      %s53 = ssub.s32 %s31, %s45
      %s54 = sor.u32 %s52, %s53
      %p55 = scmp.eq.s32.totalorder %s54, 0
      %s57 = sadd.s32 %s56, 1
      %s58 = scalar_select %p55, %s56, %s57
      %p61 = pneg %p55
      %p62 = scmp.eq.s32.totalorder %s23, 1
      %p63 = por %p61, %p62
      %p64 = scmp.ne.s32.totalorder %s56, %s59
      %p65 = scmp.eq.s32.totalorder %s23, 0
      %p66 = por %p64, %p65
      %p67 = scmp.ne.s32.totalorder %s56, %s59
      %p68 = scmp.eq.s32.totalorder %s28, 1
      %p69 = por %p67, %p68
      %p70 = scmp.ne.s32.totalorder %s59, %s60
      %p71 = scmp.eq.s32.totalorder %s28, 0
      %p72 = por %p70, %p71
      %p73 = scmp.ne.s32.totalorder %s59, %s60
      %p74 = scmp.eq.s32.totalorder %s29, 1
      %p75 = por %p73, %p74
      %p77 = scmp.ne.s32.totalorder %s60, %s76
      %p78 = scmp.eq.s32.totalorder %s29, 0
      %p79 = por %p77, %p78
      %s80 = ssub.s32 %s30, %s49
      %s81 = ssub.s32 %s31, %s45
      %s82 = sor.u32 %s80, %s81
      %p83 = scmp.eq.s32.totalorder %s82, 0
      %s85 = sadd.s32 %s84, 1
      %s86 = scalar_select %p83, %s84, %s85
      %p89 = pneg %p83
      %p90 = scmp.eq.s32.totalorder %s23, 1
      %p91 = por %p89, %p90
      %p92 = scmp.ne.s32.totalorder %s84, %s87
      %p93 = scmp.eq.s32.totalorder %s23, 0
      %p94 = por %p92, %p93
      %p95 = scmp.ne.s32.totalorder %s84, %s87
      %p96 = scmp.eq.s32.totalorder %s28, 1
      %p97 = por %p95, %p96
      %p98 = scmp.ne.s32.totalorder %s87, %s88
      %p99 = scmp.eq.s32.totalorder %s28, 0
      %p100 = por %p98, %p99
      %p101 = scmp.ne.s32.totalorder %s87, %s88
      %p102 = scmp.eq.s32.totalorder %s29, 1
      %p103 = por %p101, %p102
      %p105 = scmp.ne.s32.totalorder %s88, %s104
      %p106 = scmp.eq.s32.totalorder %s29, 0
      %p107 = por %p105, %p106
      %s108 = ssub.s32 %s30, %s49
      %s109 = ssub.s32 %s31, %s45
      %s110 = sor.u32 %s108, %s109
      %p111 = scmp.eq.s32.totalorder %s110, 0
      %s113 = sadd.s32 %s112, 1
      %s114 = scalar_select %p111, %s112, %s113
      %p117 = pneg %p111
      %p118 = scmp.eq.s32.totalorder %s23, 1
      %p119 = por %p117, %p118
      %p120 = scmp.ne.s32.totalorder %s112, %s115
      %p121 = scmp.eq.s32.totalorder %s23, 0
      %p122 = por %p120, %p121
      %p123 = scmp.ne.s32.totalorder %s112, %s115
      %p124 = scmp.eq.s32.totalorder %s28, 1
      %p125 = por %p123, %p124
      %p126 = scmp.ne.s32.totalorder %s115, %s116
      %p127 = scmp.eq.s32.totalorder %s28, 0
      %p128 = por %p126, %p127
      %p129 = scmp.ne.s32.totalorder %s115, %s116
      %p130 = scmp.eq.s32.totalorder %s29, 1
      %p131 = por %p129, %p130
      %p133 = scmp.ne.s32.totalorder %s116, %s132
      %p134 = scmp.eq.s32.totalorder %s29, 0
      %p135 = por %p133, %p134
      %s136 = ssub.s32 %s30, %s49
      %s137 = ssub.s32 %s32, %s41
      %s138 = sor.u32 %s136, %s137
      %s139 = ssub.s32 %s31, %s45
      %s140 = sor.u32 %s138, %s139
      %p141 = scmp.eq.s32.totalorder %s140, 0
      %s143 = sadd.s32 %s142, 1
      %s144 = scalar_select %p141, %s142, %s143
      %p147 = pneg %p141
      %p148 = scmp.eq.s32.totalorder %s23, 1
      %p149 = por %p147, %p148
      %p150 = scmp.ne.s32.totalorder %s142, %s145
      %p151 = scmp.eq.s32.totalorder %s23, 0
      %p152 = por %p150, %p151
      %p153 = scmp.ne.s32.totalorder %s142, %s145
      %p154 = scmp.eq.s32.totalorder %s28, 1
      %p155 = por %p153, %p154
      %p156 = scmp.ne.s32.totalorder %s145, %s146
      %p157 = scmp.eq.s32.totalorder %s28, 0
      %p158 = por %p156, %p157
      %p159 = scmp.ne.s32.totalorder %s145, %s146
      %p160 = scmp.eq.s32.totalorder %s29, 1
      %p161 = por %p159, %p160
      %p163 = scmp.ne.s32.totalorder %s146, %s162
      %p164 = scmp.eq.s32.totalorder %s29, 0
      %p165 = por %p163, %p164
      %p166 = scmp.le.s32.totalorder 1, %s23
      %p167 = scmp.lt.s32.totalorder %s23, 3
      %p168 = pnand %p166, %p167
      %p169 = pneg %p168
      // Predicated region
      $region9: #{tpu_custom_call.1} parent=5 // pred_check
        _
      $region10: #{tpu_custom_call.1} parent=5 // pred_check_branch
        %171 = sbr.rel (%p168) target = $region12
      $region11: #{tpu_custom_call.1} parent=5 // pred_region
        %s172 = ssub.s32 %s23, 1
      $region12: #{tpu_custom_call.1} parent=5 // pred_fallthru
        _
      %p173 = scmp.lt.s32.totalorder %s23, 2
      // Predicated region
      $region13: #{tpu_custom_call.1} parent=5 // pred_check
        %p174 = pneg %p173
      $region14: #{tpu_custom_call.1} parent=5 // pred_check_branch
        %176 = sbr.rel (%p174) target = $region16
      $region15: #{tpu_custom_call.1} parent=5 // pred_region
        // Predicated region
        $region17: #{tpu_custom_call.1} parent=15 // pred_check
          %p177 = pneg %p66
        $region18: #{tpu_custom_call.1} parent=15 // pred_check_branch
          %179 = sbr.rel (%p177) target = $region20
        $region19: #{tpu_custom_call.1} parent=15 // pred_region
          %s180 = sand.u32 %s56, 1
          %s181 = scalar_lea.sflag [#allocation5], %s180
          %s182 = sand.u32 %s56, 1
          %s183 = smul.addr %s182, 8
          %s184 = scalar_lea.vmem [#allocation4], %s183
          %s186 = ssub.s32 128, 128
          %187 = vsyncadd %s181, %s186
          %s188 = sadd.s32 %s31, %s32
          %s189 = sadd.s32 %s188, %s30
          %s190 = smul.addr %s189, 128
          %s191 = scalar_lea.hbm %s1, %s190
          %s193 = sshll.u32 %s184, 4
          %s194 = int_to_ptr.vmem [resolvable:$true] %s193
          %196 = dma.hbm_to_vmem [thread:$0]  %s191, 128, %s194, %s181
        $region20: #{tpu_custom_call.1} parent=15 // pred_fallthru
          _
        // Predicated region
        $region21: #{tpu_custom_call.1} parent=15 // pred_check
          %p197 = pneg %p94
        $region22: #{tpu_custom_call.1} parent=15 // pred_check_branch
          %199 = sbr.rel (%p197) target = $region24
        $region23: #{tpu_custom_call.1} parent=15 // pred_region
          %s200 = sand.u32 %s23, 1
          %s201 = scalar_lea.sflag [#allocation8], %s200
          %s202 = sand.u32 %s84, 1
          %s203 = smul.addr %s202, 8
          %s204 = scalar_lea.vmem [#allocation7], %s203
          %s206 = ssub.s32 128, 128
          %207 = vsyncadd %s201, %s206
          %s208 = sadd.s32 %s31, %s30
          %s209 = smul.addr %s208, 128
          %s210 = scalar_lea.hbm %s2, %s209
          %s212 = sshll.u32 %s204, 4
          %s213 = int_to_ptr.vmem [resolvable:$true] %s212
          %215 = dma.hbm_to_vmem [thread:$0]  %s210, 128, %s213, %s201
        $region24: #{tpu_custom_call.1} parent=15 // pred_fallthru
          _
        // Predicated region
        $region25: #{tpu_custom_call.1} parent=15 // pred_check
          %p216 = pneg %p122
        $region26: #{tpu_custom_call.1} parent=15 // pred_check_branch
          %218 = sbr.rel (%p216) target = $region28
        $region27: #{tpu_custom_call.1} parent=15 // pred_region
          %s219 = sand.u32 %s23, 1
          %s220 = scalar_lea.sflag [#allocation8], %s219
          %s221 = sand.u32 %s112, 1
          %s222 = smul.addr %s221, 8
          %s223 = scalar_lea.vmem [#allocation9], %s222
          %s225 = ssub.s32 128, 128
          %226 = vsyncadd %s220, %s225
          %s227 = sadd.s32 %s31, %s30
          %s228 = smul.addr %s227, 128
          %s229 = scalar_lea.hbm %s3, %s228
          %s231 = sshll.u32 %s223, 4
          %s232 = int_to_ptr.vmem [resolvable:$true] %s231
          %234 = dma.hbm_to_vmem [thread:$0]  %s229, 128, %s232, %s220
        $region28: #{tpu_custom_call.1} parent=15 // pred_fallthru
          _
      $region16: #{tpu_custom_call.1} parent=5 // pred_fallthru
        _
      %p235 = scmp.le.s32.totalorder 1, %s23
      %p236 = scmp.lt.s32.totalorder %s23, 3
      %p237 = pnand %p235, %p236
      %p238 = pneg %p237
      // Predicated region
      $region29: #{tpu_custom_call.1} parent=5 // pred_check
        _
      $region30: #{tpu_custom_call.1} parent=5 // pred_check_branch
        %240 = sbr.rel (%p237) target = $region32
      $region31: #{tpu_custom_call.1} parent=5 // pred_region
        %s241 = ssub.s32 %s23, 1
        %s242 = sand.u32 %s59, 1
        %s243 = scalar_lea.sflag [#allocation5], %s242
        %s244 = sand.u32 %s59, 1
        %s245 = smul.addr %s244, 8
        %s246 = scalar_lea.vmem [#allocation4], %s245
        // Predicated region
        $region33: #{tpu_custom_call.1} parent=31 // pred_check
          %p247 = pneg %p72
        $region34: #{tpu_custom_call.1} parent=31 // pred_check_branch
          %249 = sbr.rel (%p247) target = $region36
        $region35: #{tpu_custom_call.1} parent=31 // pred_region
          %250 = dma.done %s243, 128
        $region36: #{tpu_custom_call.1} parent=31 // pred_fallthru
          _
        %s251 = sand.u32 %s28, 1
        %s252 = scalar_lea.sflag [#allocation8], %s251
        %s253 = sand.u32 %s87, 1
        %s254 = smul.addr %s253, 8
        %s255 = scalar_lea.vmem [#allocation7], %s254
        // Predicated region
        $region37: #{tpu_custom_call.1} parent=31 // pred_check
          %p256 = pneg %p100
        $region38: #{tpu_custom_call.1} parent=31 // pred_check_branch
          %258 = sbr.rel (%p256) target = $region40
        $region39: #{tpu_custom_call.1} parent=31 // pred_region
          %259 = dma.done %s252, 128
        $region40: #{tpu_custom_call.1} parent=31 // pred_fallthru
          _
        %s260 = sand.u32 %s28, 1
        %s261 = scalar_lea.sflag [#allocation8], %s260
        %s262 = sand.u32 %s115, 1
        %s263 = smul.addr %s262, 8
        %s264 = scalar_lea.vmem [#allocation9], %s263
        // Predicated region
        $region41: #{tpu_custom_call.1} parent=31 // pred_check
          %p265 = pneg %p128
        $region42: #{tpu_custom_call.1} parent=31 // pred_check_branch
          %267 = sbr.rel (%p265) target = $region44
        $region43: #{tpu_custom_call.1} parent=31 // pred_region
          %268 = dma.done %s261, 128
        $region44: #{tpu_custom_call.1} parent=31 // pred_fallthru
          _
        %s269 = sand.u32 %s59, 1
        %s270 = scalar_lea.sflag [#allocation5], %s269
        %s271 = sand.u32 %s59, 1
        %s272 = smul.addr %s271, 8
        %s273 = scalar_lea.vmem [#allocation4], %s272
        %p274 = pneg %p72
        %p275 = pneg %p69
        %s276 = sand.u32 %s28, 1
        %s277 = scalar_lea.sflag [#allocation8], %s276
        %s278 = sand.u32 %s87, 1
        %s279 = smul.addr %s278, 8
        %s280 = scalar_lea.vmem [#allocation7], %s279
        %p281 = pneg %p100
        %p282 = pneg %p97
        %s283 = sand.u32 %s28, 1
        %s284 = scalar_lea.sflag [#allocation8], %s283
        %s285 = sand.u32 %s115, 1
        %s286 = smul.addr %s285, 8
        %s287 = scalar_lea.vmem [#allocation9], %s286
        %p288 = pneg %p128
        %p289 = pneg %p125
        %p290 = pneg %p158
        %p291 = pneg %p155
        %s292 = sand.u32 %s145, 1
        %s293 = scalar_lea.sflag [#allocation6], %s292
        %s294 = sand.u32 %s145, 1
        %s295 = smul.addr %s294, 8
        %s296 = scalar_lea.vmem [#allocation10], %s295
        %s297 = sld [smem:[#allocation3 + %s33]]
        %v298 = vlaneseq
        %v299 = vand.u32 %v298, 127
        %v300 = vstv %s297
        %vm301 = vcmp.lt.s32.totalorder %v299, %v300
        %v302 = vsel %vm301, 1, 0
        %v303 = vcvt.s32.f32 %v302
        %v304 = vld [vmem:[%s246] sm:$0xff]
        %v305 = vld [vmem:[%s255] sm:$0xff]
        %v306 = vld [vmem:[%s264] sm:$0xff]
        %vm307 = vcmask 64512
        %v309 = vsel %vm307, %v304, 0
        %v312 = vsel %vm307, %v305, 0
        %314 = vmatprep.subr.mxu0 0.0
        %315 = vmatpush1.xpose.msra.mxu0 %v312
        %316 = vmatprep.subr.mxu0 0.0
        %317 = vmatpush1.xpose.msra.mxu0 0.0
        %318 = vmatprep.subr.mxu0 0.0
        %319 = vmatpush1.xpose.msra.mxu0 0.0
        %320 = vmatprep.subr.mxu0 0.0
        %321 = vmatpush1.xpose.msra.mxu0 0.0
        %322 = vmatprep.subr.mxu0 0.0
        %323 = vmatpush1.xpose.msra.mxu0 0.0
        %324 = vmatprep.subr.mxu0 0.0
        %325 = vmatpush1.xpose.msra.mxu0 0.0
        %326 = vmatprep.subr.mxu0 0.0
        %327 = vmatpush1.xpose.msra.mxu0 0.0
        %328 = vmatprep.subr.mxu0 0.0
        %329 = vmatpush1.xpose.msra.mxu0 0.0
        %330 = vmatprep.subr.mxu0 0.0
        %331 = vmatpush1.xpose.msra.mxu0 0.0
        %332 = vmatprep.subr.mxu0 0.0
        %333 = vmatpush1.xpose.msra.mxu0 0.0
        %334 = vmatprep.subr.mxu0 0.0
        %335 = vmatpush1.xpose.msra.mxu0 0.0
        %336 = vmatprep.subr.mxu0 0.0
        %337 = vmatpush1.xpose.msra.mxu0 0.0
        %338 = vmatprep.subr.mxu0 0.0
        %339 = vmatpush1.xpose.msra.mxu0 0.0
        %340 = vmatprep.subr.mxu0 0.0
        %341 = vmatpush1.xpose.msra.mxu0 0.0
        %342 = vmatprep.subr.mxu0 0.0
        %343 = vmatpush1.xpose.msra.mxu0 0.0
        %344 = vmatprep.subr.mxu0 0.0
        %345 = vmatpush1.xpose.msra.mxu0 0.0
        %346 = vmatprep.subr.mxu0 0.0
        %347 = vmatpush1.xpose.msra.mxu0 0.0
        %348 = vmatprep.subr.mxu0 0.0
        %349 = vmatpush1.xpose.msra.mxu0 0.0
        %350 = vmatprep.subr.mxu0 0.0
        %351 = vmatpush1.xpose.msra.mxu0 0.0
        %352 = vmatprep.subr.mxu0 0.0
        %353 = vmatpush1.xpose.msra.mxu0 0.0
        %354 = vmatprep.subr.mxu0 0.0
        %355 = vmatpush1.xpose.msra.mxu0 0.0
        %356 = vmatprep.subr.mxu0 0.0
        %357 = vmatpush1.xpose.msra.mxu0 0.0
        %358 = vmatprep.subr.mxu0 0.0
        %359 = vmatpush1.xpose.msra.mxu0 0.0
        %360 = vmatprep.subr.mxu0 0.0
        %361 = vmatpush1.xpose.msra.mxu0 0.0
        %362 = vmatprep.subr.mxu0 0.0
        %363 = vmatpush1.xpose.msra.mxu0 0.0
        %364 = vmatprep.subr.mxu0 0.0
        %365 = vmatpush1.xpose.msra.mxu0 0.0
        %366 = vmatprep.subr.mxu0 0.0
        %367 = vmatpush1.xpose.msra.mxu0 0.0
        %368 = vmatprep.subr.mxu0 0.0
        %369 = vmatpush1.xpose.msra.mxu0 0.0
        %370 = vmatprep.subr.mxu0 0.0
        %371 = vmatpush1.xpose.msra.mxu0 0.0
        %372 = vmatprep.subr.mxu0 0.0
        %373 = vmatpush1.xpose.msra.mxu0 0.0
        %374 = vmatprep.subr.mxu0 0.0
        %375 = vmatpush1.xpose.msra.mxu0 0.0
        %376 = vmatprep.subr.mxu0 0.0
        %377 = vmatpush1.xpose.msra.mxu0 0.0
        %378 = vmatprep.mubr.f32.mxu0 0.0
        %379 = vmatmul.mubr.f32.gmra.mrb[0].mxu0 %v309
        %v380 = vpop.f32.mrb[0].mxu0
        %v381 = vadd.f32 0.0, %v380
        %v382 = vpop.f32.mrb[0].mxu0
        %383 = vdwg.mxu0
        %vm384 = vcmp.eq.s32.totalorder %v302, 1
        %v385 = vsel %vm384, %v381, -3.4028235e+38
        %v386 = vsel %vm307, %v385, -inf
        %387 = vmax.xlane.f32.xlu0 %v386
        %v388 = vpop.xlane.xlu0 %387
        %v389 = vsub.f32 %v385, %v388
        %v390 = vmul.f32 %v389, 1.442695
        %v391 = vpow.pop %v390
        %v392 = vmul.f32 %v391, %v303
        %v393 = vsel %vm307, %v392, 0.0
        %394 = vadd.xlane.f32.xlu0 %v393
        %v395 = vpop.xlane.xlu0 %394
        %vm396 = vcmp.eq.f32.partialorder %v395, 0.0
        %v397 = vsel %vm396, 1.0, %v395
        %v399 = vsel %vm307, %v392, 0
        %401 = vmatprep.subr.mxu0 0.0
        %402 = vmatpush1.msra.mxu0 %v306
        %403 = vmatprep.subr.mxu0 0.0
        %404 = vmatpush1.msra.mxu0 0.0
        %405 = vmatprep.subr.mxu0 0.0
        %406 = vmatpush1.msra.mxu0 0.0
        %407 = vmatprep.subr.mxu0 0.0
        %408 = vmatpush1.msra.mxu0 0.0
        %409 = vmatprep.subr.mxu0 0.0
        %410 = vmatpush1.msra.mxu0 0.0
        %411 = vmatprep.subr.mxu0 0.0
        %412 = vmatpush1.msra.mxu0 0.0
        %413 = vmatprep.subr.mxu0 0.0
        %414 = vmatpush1.msra.mxu0 0.0
        %415 = vmatprep.subr.mxu0 0.0
        %416 = vmatpush1.msra.mxu0 0.0
        %417 = vmatprep.subr.mxu0 0.0
        %418 = vmatpush1.msra.mxu0 0.0
        %419 = vmatprep.subr.mxu0 0.0
        %420 = vmatpush1.msra.mxu0 0.0
        %421 = vmatprep.subr.mxu0 0.0
        %422 = vmatpush1.msra.mxu0 0.0
        %423 = vmatprep.subr.mxu0 0.0
        %424 = vmatpush1.msra.mxu0 0.0
        %425 = vmatprep.subr.mxu0 0.0
        %426 = vmatpush1.msra.mxu0 0.0
        %427 = vmatprep.subr.mxu0 0.0
        %428 = vmatpush1.msra.mxu0 0.0
        %429 = vmatprep.subr.mxu0 0.0
        %430 = vmatpush1.msra.mxu0 0.0
        %431 = vmatprep.subr.mxu0 0.0
        %432 = vmatpush1.msra.mxu0 0.0
        %433 = vmatprep.subr.mxu0 0.0
        %434 = vmatpush1.msra.mxu0 0.0
        %435 = vmatprep.subr.mxu0 0.0
        %436 = vmatpush1.msra.mxu0 0.0
        %437 = vmatprep.subr.mxu0 0.0
        %438 = vmatpush1.msra.mxu0 0.0
        %439 = vmatprep.subr.mxu0 0.0
        %440 = vmatpush1.msra.mxu0 0.0
        %441 = vmatprep.subr.mxu0 0.0
        %442 = vmatpush1.msra.mxu0 0.0
        %443 = vmatprep.subr.mxu0 0.0
        %444 = vmatpush1.msra.mxu0 0.0
        %445 = vmatprep.subr.mxu0 0.0
        %446 = vmatpush1.msra.mxu0 0.0
        %447 = vmatprep.subr.mxu0 0.0
        %448 = vmatpush1.msra.mxu0 0.0
        %449 = vmatprep.subr.mxu0 0.0
        %450 = vmatpush1.msra.mxu0 0.0
        %451 = vmatprep.subr.mxu0 0.0
        %452 = vmatpush1.msra.mxu0 0.0
        %453 = vmatprep.subr.mxu0 0.0
        %454 = vmatpush1.msra.mxu0 0.0
        %455 = vmatprep.subr.mxu0 0.0
        %456 = vmatpush1.msra.mxu0 0.0
        %457 = vmatprep.subr.mxu0 0.0
        %458 = vmatpush1.msra.mxu0 0.0
        %459 = vmatprep.subr.mxu0 0.0
        %460 = vmatpush1.msra.mxu0 0.0
        %461 = vmatprep.subr.mxu0 0.0
        %462 = vmatpush1.msra.mxu0 0.0
        %463 = vmatprep.subr.mxu0 0.0
        %464 = vmatpush1.msra.mxu0 0.0
        %465 = vmatprep.mubr.f32.mxu0 0.0
        %466 = vmatmul.mubr.f32.gmra.mrb[0].mxu0 %v399
        %v467 = vpop.f32.mrb[0].mxu0
        %v468 = vadd.f32 0.0, %v467
        %v469 = vpop.f32.mrb[0].mxu0
        %470 = vdwg.mxu0
        %v471 = vrcp.pop %v397
        %v472 = vmul.f32 %v468, %v471
        %473 = vst.msk [vmem:[%s296] sm:$0xff] %vm307, %v472
        %474 = vrot.lane.b32.xlu0 %v304, 120
        %v475 = vpop.permute.xlu0 %474
        %476 = vrot.lane.b32.xlu0 %v305, 120
        %v477 = vpop.permute.xlu0 %476
        %v478 = vsel %vm307, %v475, 0
        %v480 = vsel %vm307, %v477, 0
        %482 = vmatprep.subr.mxu0 0.0
        %483 = vmatpush1.xpose.msra.mxu0 %v480
        %484 = vmatprep.subr.mxu0 0.0
        %485 = vmatpush1.xpose.msra.mxu0 0.0
        %486 = vmatprep.subr.mxu0 0.0
        %487 = vmatpush1.xpose.msra.mxu0 0.0
        %488 = vmatprep.subr.mxu0 0.0
        %489 = vmatpush1.xpose.msra.mxu0 0.0
        %490 = vmatprep.subr.mxu0 0.0
        %491 = vmatpush1.xpose.msra.mxu0 0.0
        %492 = vmatprep.subr.mxu0 0.0
        %493 = vmatpush1.xpose.msra.mxu0 0.0
        %494 = vmatprep.subr.mxu0 0.0
        %495 = vmatpush1.xpose.msra.mxu0 0.0
        %496 = vmatprep.subr.mxu0 0.0
        %497 = vmatpush1.xpose.msra.mxu0 0.0
        %498 = vmatprep.subr.mxu0 0.0
        %499 = vmatpush1.xpose.msra.mxu0 0.0
        %500 = vmatprep.subr.mxu0 0.0
        %501 = vmatpush1.xpose.msra.mxu0 0.0
        %502 = vmatprep.subr.mxu0 0.0
        %503 = vmatpush1.xpose.msra.mxu0 0.0
        %504 = vmatprep.subr.mxu0 0.0
        %505 = vmatpush1.xpose.msra.mxu0 0.0
        %506 = vmatprep.subr.mxu0 0.0
        %507 = vmatpush1.xpose.msra.mxu0 0.0
        %508 = vmatprep.subr.mxu0 0.0
        %509 = vmatpush1.xpose.msra.mxu0 0.0
        %510 = vmatprep.subr.mxu0 0.0
        %511 = vmatpush1.xpose.msra.mxu0 0.0
        %512 = vmatprep.subr.mxu0 0.0
        %513 = vmatpush1.xpose.msra.mxu0 0.0
        %514 = vmatprep.subr.mxu0 0.0
        %515 = vmatpush1.xpose.msra.mxu0 0.0
        %516 = vmatprep.subr.mxu0 0.0
        %517 = vmatpush1.xpose.msra.mxu0 0.0
        %518 = vmatprep.subr.mxu0 0.0
        %519 = vmatpush1.xpose.msra.mxu0 0.0
        %520 = vmatprep.subr.mxu0 0.0
        %521 = vmatpush1.xpose.msra.mxu0 0.0
        %522 = vmatprep.subr.mxu0 0.0
        %523 = vmatpush1.xpose.msra.mxu0 0.0
        %524 = vmatprep.subr.mxu0 0.0
        %525 = vmatpush1.xpose.msra.mxu0 0.0
        %526 = vmatprep.subr.mxu0 0.0
        %527 = vmatpush1.xpose.msra.mxu0 0.0
        %528 = vmatprep.subr.mxu0 0.0
        %529 = vmatpush1.xpose.msra.mxu0 0.0
        %530 = vmatprep.subr.mxu0 0.0
        %531 = vmatpush1.xpose.msra.mxu0 0.0
        %532 = vmatprep.subr.mxu0 0.0
        %533 = vmatpush1.xpose.msra.mxu0 0.0
        %534 = vmatprep.subr.mxu0 0.0
        %535 = vmatpush1.xpose.msra.mxu0 0.0
        %536 = vmatprep.subr.mxu0 0.0
        %537 = vmatpush1.xpose.msra.mxu0 0.0
        %538 = vmatprep.subr.mxu0 0.0
        %539 = vmatpush1.xpose.msra.mxu0 0.0
        %540 = vmatprep.subr.mxu0 0.0
        %541 = vmatpush1.xpose.msra.mxu0 0.0
        %542 = vmatprep.subr.mxu0 0.0
        %543 = vmatpush1.xpose.msra.mxu0 0.0
        %544 = vmatprep.subr.mxu0 0.0
        %545 = vmatpush1.xpose.msra.mxu0 0.0
        %546 = vmatprep.mubr.f32.mxu0 0.0
        %547 = vmatmul.mubr.f32.gmra.mrb[0].mxu0 %v478
        %v548 = vpop.f32.mrb[0].mxu0
        %v549 = vadd.f32 0.0, %v548
        %v550 = vpop.f32.mrb[0].mxu0
        %551 = vdwg.mxu0
        %v552 = vsel %vm384, %v549, -3.4028235e+38
        %v553 = vsel %vm307, %v552, -inf
        %554 = vmax.xlane.f32.xlu0 %v553
        %v555 = vpop.xlane.xlu0 %554
        %v556 = vsub.f32 %v552, %v555
        %v557 = vmul.f32 %v556, 1.442695
        %v558 = vpow.pop %v557
        %v559 = vmul.f32 %v558, %v303
        %v560 = vsel %vm307, %v559, 0.0
        %561 = vadd.xlane.f32.xlu0 %v560
        %v562 = vpop.xlane.xlu0 %561
        %vm563 = vcmp.eq.f32.partialorder %v562, 0.0
        %v564 = vsel %vm563, 1.0, %v562
        %566 = vrot.lane.b32.xlu0 %v306, 120
        %v567 = vpop.permute.xlu0 %566
        %v570 = vsel %vm307, %v559, 0
        %572 = vmatprep.subr.mxu0 0.0
        %573 = vmatpush1.msra.mxu0 %v567
        %574 = vmatprep.subr.mxu0 0.0
        %575 = vmatpush1.msra.mxu0 0.0
        %576 = vmatprep.subr.mxu0 0.0
        %577 = vmatpush1.msra.mxu0 0.0
        %578 = vmatprep.subr.mxu0 0.0
        %579 = vmatpush1.msra.mxu0 0.0
        %580 = vmatprep.subr.mxu0 0.0
        %581 = vmatpush1.msra.mxu0 0.0
        %582 = vmatprep.subr.mxu0 0.0
        %583 = vmatpush1.msra.mxu0 0.0
        %584 = vmatprep.subr.mxu0 0.0
        %585 = vmatpush1.msra.mxu0 0.0
        %586 = vmatprep.subr.mxu0 0.0
        %587 = vmatpush1.msra.mxu0 0.0
        %588 = vmatprep.subr.mxu0 0.0
        %589 = vmatpush1.msra.mxu0 0.0
        %590 = vmatprep.subr.mxu0 0.0
        %591 = vmatpush1.msra.mxu0 0.0
        %592 = vmatprep.subr.mxu0 0.0
        %593 = vmatpush1.msra.mxu0 0.0
        %594 = vmatprep.subr.mxu0 0.0
        %595 = vmatpush1.msra.mxu0 0.0
        %596 = vmatprep.subr.mxu0 0.0
        %597 = vmatpush1.msra.mxu0 0.0
        %598 = vmatprep.subr.mxu0 0.0
        %599 = vmatpush1.msra.mxu0 0.0
        %600 = vmatprep.subr.mxu0 0.0
        %601 = vmatpush1.msra.mxu0 0.0
        %602 = vmatprep.subr.mxu0 0.0
        %603 = vmatpush1.msra.mxu0 0.0
        %604 = vmatprep.subr.mxu0 0.0
        %605 = vmatpush1.msra.mxu0 0.0
        %606 = vmatprep.subr.mxu0 0.0
        %607 = vmatpush1.msra.mxu0 0.0
        %608 = vmatprep.subr.mxu0 0.0
        %609 = vmatpush1.msra.mxu0 0.0
        %610 = vmatprep.subr.mxu0 0.0
        %611 = vmatpush1.msra.mxu0 0.0
        %612 = vmatprep.subr.mxu0 0.0
        %613 = vmatpush1.msra.mxu0 0.0
        %614 = vmatprep.subr.mxu0 0.0
        %615 = vmatpush1.msra.mxu0 0.0
        %616 = vmatprep.subr.mxu0 0.0
        %617 = vmatpush1.msra.mxu0 0.0
        %618 = vmatprep.subr.mxu0 0.0
        %619 = vmatpush1.msra.mxu0 0.0
        %620 = vmatprep.subr.mxu0 0.0
        %621 = vmatpush1.msra.mxu0 0.0
        %622 = vmatprep.subr.mxu0 0.0
        %623 = vmatpush1.msra.mxu0 0.0
        %624 = vmatprep.subr.mxu0 0.0
        %625 = vmatpush1.msra.mxu0 0.0
        %626 = vmatprep.subr.mxu0 0.0
        %627 = vmatpush1.msra.mxu0 0.0
        %628 = vmatprep.subr.mxu0 0.0
        %629 = vmatpush1.msra.mxu0 0.0
        %630 = vmatprep.subr.mxu0 0.0
        %631 = vmatpush1.msra.mxu0 0.0
        %632 = vmatprep.subr.mxu0 0.0
        %633 = vmatpush1.msra.mxu0 0.0
        %634 = vmatprep.subr.mxu0 0.0
        %635 = vmatpush1.msra.mxu0 0.0
        %636 = vmatprep.mubr.f32.mxu0 0.0
        %637 = vmatmul.mubr.f32.gmra.mrb[0].mxu0 %v570
        %v638 = vpop.f32.mrb[0].mxu0
        %v639 = vadd.f32 0.0, %v638
        %v640 = vpop.f32.mrb[0].mxu0
        %641 = vdwg.mxu0
        %v642 = vrcp.pop %v564
        %v643 = vmul.f32 %v639, %v642
        %645 = vrot.lane.b32.xlu0 %v643, 8
        %v646 = vpop.permute.xlu0 %645
        %vm648 = vcmask 130112
        %649 = vst.msk [vmem:[%s296] sm:$0xff] %vm648, %v646
        %650 = vrot.lane.b32.xlu0 %v304, 112
        %v651 = vpop.permute.xlu0 %650
        %652 = vrot.lane.b32.xlu0 %v305, 112
        %v653 = vpop.permute.xlu0 %652
        %v654 = vsel %vm307, %v651, 0
        %v656 = vsel %vm307, %v653, 0
        %658 = vmatprep.subr.mxu0 0.0
        %659 = vmatpush1.xpose.msra.mxu0 %v656
        %660 = vmatprep.subr.mxu0 0.0
        %661 = vmatpush1.xpose.msra.mxu0 0.0
        %662 = vmatprep.subr.mxu0 0.0
        %663 = vmatpush1.xpose.msra.mxu0 0.0
        %664 = vmatprep.subr.mxu0 0.0
        %665 = vmatpush1.xpose.msra.mxu0 0.0
        %666 = vmatprep.subr.mxu0 0.0
        %667 = vmatpush1.xpose.msra.mxu0 0.0
        %668 = vmatprep.subr.mxu0 0.0
        %669 = vmatpush1.xpose.msra.mxu0 0.0
        %670 = vmatprep.subr.mxu0 0.0
        %671 = vmatpush1.xpose.msra.mxu0 0.0
        %672 = vmatprep.subr.mxu0 0.0
        %673 = vmatpush1.xpose.msra.mxu0 0.0
        %674 = vmatprep.subr.mxu0 0.0
        %675 = vmatpush1.xpose.msra.mxu0 0.0
        %676 = vmatprep.subr.mxu0 0.0
        %677 = vmatpush1.xpose.msra.mxu0 0.0
        %678 = vmatprep.subr.mxu0 0.0
        %679 = vmatpush1.xpose.msra.mxu0 0.0
        %680 = vmatprep.subr.mxu0 0.0
        %681 = vmatpush1.xpose.msra.mxu0 0.0
        %682 = vmatprep.subr.mxu0 0.0
        %683 = vmatpush1.xpose.msra.mxu0 0.0
        %684 = vmatprep.subr.mxu0 0.0
        %685 = vmatpush1.xpose.msra.mxu0 0.0
        %686 = vmatprep.subr.mxu0 0.0
        %687 = vmatpush1.xpose.msra.mxu0 0.0
        %688 = vmatprep.subr.mxu0 0.0
        %689 = vmatpush1.xpose.msra.mxu0 0.0
        %690 = vmatprep.subr.mxu0 0.0
        %691 = vmatpush1.xpose.msra.mxu0 0.0
        %692 = vmatprep.subr.mxu0 0.0
        %693 = vmatpush1.xpose.msra.mxu0 0.0
        %694 = vmatprep.subr.mxu0 0.0
        %695 = vmatpush1.xpose.msra.mxu0 0.0
        %696 = vmatprep.subr.mxu0 0.0
        %697 = vmatpush1.xpose.msra.mxu0 0.0
        %698 = vmatprep.subr.mxu0 0.0
        %699 = vmatpush1.xpose.msra.mxu0 0.0
        %700 = vmatprep.subr.mxu0 0.0
        %701 = vmatpush1.xpose.msra.mxu0 0.0
        %702 = vmatprep.subr.mxu0 0.0
        %703 = vmatpush1.xpose.msra.mxu0 0.0
        %704 = vmatprep.subr.mxu0 0.0
        %705 = vmatpush1.xpose.msra.mxu0 0.0
        %706 = vmatprep.subr.mxu0 0.0
        %707 = vmatpush1.xpose.msra.mxu0 0.0
        %708 = vmatprep.subr.mxu0 0.0
        %709 = vmatpush1.xpose.msra.mxu0 0.0
        %710 = vmatprep.subr.mxu0 0.0
        %711 = vmatpush1.xpose.msra.mxu0 0.0
        %712 = vmatprep.subr.mxu0 0.0
        %713 = vmatpush1.xpose.msra.mxu0 0.0
        %714 = vmatprep.subr.mxu0 0.0
        %715 = vmatpush1.xpose.msra.mxu0 0.0
        %716 = vmatprep.subr.mxu0 0.0
        %717 = vmatpush1.xpose.msra.mxu0 0.0
        %718 = vmatprep.subr.mxu0 0.0
        %719 = vmatpush1.xpose.msra.mxu0 0.0
        %720 = vmatprep.subr.mxu0 0.0
        %721 = vmatpush1.xpose.msra.mxu0 0.0
        %722 = vmatprep.mubr.f32.mxu0 0.0
        %723 = vmatmul.mubr.f32.gmra.mrb[0].mxu0 %v654
        %v724 = vpop.f32.mrb[0].mxu0
        %v725 = vadd.f32 0.0, %v724
        %v726 = vpop.f32.mrb[0].mxu0
        %727 = vdwg.mxu0
        %v728 = vsel %vm384, %v725, -3.4028235e+38
        %v729 = vsel %vm307, %v728, -inf
        %730 = vmax.xlane.f32.xlu0 %v729
        %v731 = vpop.xlane.xlu0 %730
        %v732 = vsub.f32 %v728, %v731
        %v733 = vmul.f32 %v732, 1.442695
        %v734 = vpow.pop %v733
        %v735 = vmul.f32 %v734, %v303
        %v736 = vsel %vm307, %v735, 0.0
        %737 = vadd.xlane.f32.xlu0 %v736
        %v738 = vpop.xlane.xlu0 %737
        %vm739 = vcmp.eq.f32.partialorder %v738, 0.0
        %v740 = vsel %vm739, 1.0, %v738
        %741 = vrot.lane.b32.xlu0 %v306, 112
        %v742 = vpop.permute.xlu0 %741
        %v745 = vsel %vm307, %v735, 0
        %747 = vmatprep.subr.mxu0 0.0
        %748 = vmatpush1.msra.mxu0 %v742
        %749 = vmatprep.subr.mxu0 0.0
        %750 = vmatpush1.msra.mxu0 0.0
        %751 = vmatprep.subr.mxu0 0.0
        %752 = vmatpush1.msra.mxu0 0.0
        %753 = vmatprep.subr.mxu0 0.0
        %754 = vmatpush1.msra.mxu0 0.0
        %755 = vmatprep.subr.mxu0 0.0
        %756 = vmatpush1.msra.mxu0 0.0
        %757 = vmatprep.subr.mxu0 0.0
        %758 = vmatpush1.msra.mxu0 0.0
        %759 = vmatprep.subr.mxu0 0.0
        %760 = vmatpush1.msra.mxu0 0.0
        %761 = vmatprep.subr.mxu0 0.0
        %762 = vmatpush1.msra.mxu0 0.0
        %763 = vmatprep.subr.mxu0 0.0
        %764 = vmatpush1.msra.mxu0 0.0
        %765 = vmatprep.subr.mxu0 0.0
        %766 = vmatpush1.msra.mxu0 0.0
        %767 = vmatprep.subr.mxu0 0.0
        %768 = vmatpush1.msra.mxu0 0.0
        %769 = vmatprep.subr.mxu0 0.0
        %770 = vmatpush1.msra.mxu0 0.0
        %771 = vmatprep.subr.mxu0 0.0
        %772 = vmatpush1.msra.mxu0 0.0
        %773 = vmatprep.subr.mxu0 0.0
        %774 = vmatpush1.msra.mxu0 0.0
        %775 = vmatprep.subr.mxu0 0.0
        %776 = vmatpush1.msra.mxu0 0.0
        %777 = vmatprep.subr.mxu0 0.0
        %778 = vmatpush1.msra.mxu0 0.0
        %779 = vmatprep.subr.mxu0 0.0
        %780 = vmatpush1.msra.mxu0 0.0
        %781 = vmatprep.subr.mxu0 0.0
        %782 = vmatpush1.msra.mxu0 0.0
        %783 = vmatprep.subr.mxu0 0.0
        %784 = vmatpush1.msra.mxu0 0.0
        %785 = vmatprep.subr.mxu0 0.0
        %786 = vmatpush1.msra.mxu0 0.0
        %787 = vmatprep.subr.mxu0 0.0
        %788 = vmatpush1.msra.mxu0 0.0
        %789 = vmatprep.subr.mxu0 0.0
        %790 = vmatpush1.msra.mxu0 0.0
        %791 = vmatprep.subr.mxu0 0.0
        %792 = vmatpush1.msra.mxu0 0.0
        %793 = vmatprep.subr.mxu0 0.0
        %794 = vmatpush1.msra.mxu0 0.0
        %795 = vmatprep.subr.mxu0 0.0
        %796 = vmatpush1.msra.mxu0 0.0
        %797 = vmatprep.subr.mxu0 0.0
        %798 = vmatpush1.msra.mxu0 0.0
        %799 = vmatprep.subr.mxu0 0.0
        %800 = vmatpush1.msra.mxu0 0.0
        %801 = vmatprep.subr.mxu0 0.0
        %802 = vmatpush1.msra.mxu0 0.0
        %803 = vmatprep.subr.mxu0 0.0
        %804 = vmatpush1.msra.mxu0 0.0
        %805 = vmatprep.subr.mxu0 0.0
        %806 = vmatpush1.msra.mxu0 0.0
        %807 = vmatprep.subr.mxu0 0.0
        %808 = vmatpush1.msra.mxu0 0.0
        %809 = vmatprep.subr.mxu0 0.0
        %810 = vmatpush1.msra.mxu0 0.0
        %811 = vmatprep.mubr.f32.mxu0 0.0
        %812 = vmatmul.mubr.f32.gmra.mrb[0].mxu0 %v745
        %v813 = vpop.f32.mrb[0].mxu0
        %v814 = vadd.f32 0.0, %v813
        %v815 = vpop.f32.mrb[0].mxu0
        %816 = vdwg.mxu0
        %v817 = vrcp.pop %v740
        %v818 = vmul.f32 %v814, %v817
        %820 = vrot.lane.b32.xlu0 %v818, 16
        %v821 = vpop.permute.xlu0 %820
        %vm823 = vcmask 195712
        %824 = vst.msk [vmem:[%s296] sm:$0xff] %vm823, %v821
        %825 = vrot.lane.b32.xlu0 %v304, 104
        %v826 = vpop.permute.xlu0 %825
        %827 = vrot.lane.b32.xlu0 %v305, 104
        %v828 = vpop.permute.xlu0 %827
        %v829 = vsel %vm307, %v826, 0
        %v831 = vsel %vm307, %v828, 0
        %833 = vmatprep.subr.mxu0 0.0
        %834 = vmatpush1.xpose.msra.mxu0 %v831
        %835 = vmatprep.subr.mxu0 0.0
        %836 = vmatpush1.xpose.msra.mxu0 0.0
        %837 = vmatprep.subr.mxu0 0.0
        %838 = vmatpush1.xpose.msra.mxu0 0.0
        %839 = vmatprep.subr.mxu0 0.0
        %840 = vmatpush1.xpose.msra.mxu0 0.0
        %841 = vmatprep.subr.mxu0 0.0
        %842 = vmatpush1.xpose.msra.mxu0 0.0
        %843 = vmatprep.subr.mxu0 0.0
        %844 = vmatpush1.xpose.msra.mxu0 0.0
        %845 = vmatprep.subr.mxu0 0.0
        %846 = vmatpush1.xpose.msra.mxu0 0.0
        %847 = vmatprep.subr.mxu0 0.0
        %848 = vmatpush1.xpose.msra.mxu0 0.0
        %849 = vmatprep.subr.mxu0 0.0
        %850 = vmatpush1.xpose.msra.mxu0 0.0
        %851 = vmatprep.subr.mxu0 0.0
        %852 = vmatpush1.xpose.msra.mxu0 0.0
        %853 = vmatprep.subr.mxu0 0.0
        %854 = vmatpush1.xpose.msra.mxu0 0.0
        %855 = vmatprep.subr.mxu0 0.0
        %856 = vmatpush1.xpose.msra.mxu0 0.0
        %857 = vmatprep.subr.mxu0 0.0
        %858 = vmatpush1.xpose.msra.mxu0 0.0
        %859 = vmatprep.subr.mxu0 0.0
        %860 = vmatpush1.xpose.msra.mxu0 0.0
        %861 = vmatprep.subr.mxu0 0.0
        %862 = vmatpush1.xpose.msra.mxu0 0.0
        %863 = vmatprep.subr.mxu0 0.0
        %864 = vmatpush1.xpose.msra.mxu0 0.0
        %865 = vmatprep.subr.mxu0 0.0
        %866 = vmatpush1.xpose.msra.mxu0 0.0
        %867 = vmatprep.subr.mxu0 0.0
        %868 = vmatpush1.xpose.msra.mxu0 0.0
        %869 = vmatprep.subr.mxu0 0.0
        %870 = vmatpush1.xpose.msra.mxu0 0.0
        %871 = vmatprep.subr.mxu0 0.0
        %872 = vmatpush1.xpose.msra.mxu0 0.0
        %873 = vmatprep.subr.mxu0 0.0
        %874 = vmatpush1.xpose.msra.mxu0 0.0
        %875 = vmatprep.subr.mxu0 0.0
        %876 = vmatpush1.xpose.msra.mxu0 0.0
        %877 = vmatprep.subr.mxu0 0.0
        %878 = vmatpush1.xpose.msra.mxu0 0.0
        %879 = vmatprep.subr.mxu0 0.0
        %880 = vmatpush1.xpose.msra.mxu0 0.0
        %881 = vmatprep.subr.mxu0 0.0
        %882 = vmatpush1.xpose.msra.mxu0 0.0
        %883 = vmatprep.subr.mxu0 0.0
        %884 = vmatpush1.xpose.msra.mxu0 0.0
        %885 = vmatprep.subr.mxu0 0.0
        %886 = vmatpush1.xpose.msra.mxu0 0.0
        %887 = vmatprep.subr.mxu0 0.0
        %888 = vmatpush1.xpose.msra.mxu0 0.0
        %889 = vmatprep.subr.mxu0 0.0
        %890 = vmatpush1.xpose.msra.mxu0 0.0
        %891 = vmatprep.subr.mxu0 0.0
        %892 = vmatpush1.xpose.msra.mxu0 0.0
        %893 = vmatprep.subr.mxu0 0.0
        %894 = vmatpush1.xpose.msra.mxu0 0.0
        %895 = vmatprep.subr.mxu0 0.0
        %896 = vmatpush1.xpose.msra.mxu0 0.0
        %897 = vmatprep.mubr.f32.mxu0 0.0
        %898 = vmatmul.mubr.f32.gmra.mrb[0].mxu0 %v829
        %v899 = vpop.f32.mrb[0].mxu0
        %v900 = vadd.f32 0.0, %v899
        %v901 = vpop.f32.mrb[0].mxu0
        %902 = vdwg.mxu0
        %v903 = vsel %vm384, %v900, -3.4028235e+38
        %v904 = vsel %vm307, %v903, -inf
        %905 = vmax.xlane.f32.xlu0 %v904
        %v906 = vpop.xlane.xlu0 %905
        %v907 = vsub.f32 %v903, %v906
        %v908 = vmul.f32 %v907, 1.442695
        %v909 = vpow.pop %v908
        %v910 = vmul.f32 %v909, %v303
        %v911 = vsel %vm307, %v910, 0.0
        %912 = vadd.xlane.f32.xlu0 %v911
        %v913 = vpop.xlane.xlu0 %912
        %vm914 = vcmp.eq.f32.partialorder %v913, 0.0
        %v915 = vsel %vm914, 1.0, %v913
        %916 = vrot.lane.b32.xlu0 %v306, 104
        %v917 = vpop.permute.xlu0 %916
        %v920 = vsel %vm307, %v910, 0
        %922 = vmatprep.subr.mxu0 0.0
        %923 = vmatpush1.msra.mxu0 %v917
        %924 = vmatprep.subr.mxu0 0.0
        %925 = vmatpush1.msra.mxu0 0.0
        %926 = vmatprep.subr.mxu0 0.0
        %927 = vmatpush1.msra.mxu0 0.0
        %928 = vmatprep.subr.mxu0 0.0
        %929 = vmatpush1.msra.mxu0 0.0
        %930 = vmatprep.subr.mxu0 0.0
        %931 = vmatpush1.msra.mxu0 0.0
        %932 = vmatprep.subr.mxu0 0.0
        %933 = vmatpush1.msra.mxu0 0.0
        %934 = vmatprep.subr.mxu0 0.0
        %935 = vmatpush1.msra.mxu0 0.0
        %936 = vmatprep.subr.mxu0 0.0
        %937 = vmatpush1.msra.mxu0 0.0
        %938 = vmatprep.subr.mxu0 0.0
        %939 = vmatpush1.msra.mxu0 0.0
        %940 = vmatprep.subr.mxu0 0.0
        %941 = vmatpush1.msra.mxu0 0.0
        %942 = vmatprep.subr.mxu0 0.0
        %943 = vmatpush1.msra.mxu0 0.0
        %944 = vmatprep.subr.mxu0 0.0
        %945 = vmatpush1.msra.mxu0 0.0
        %946 = vmatprep.subr.mxu0 0.0
        %947 = vmatpush1.msra.mxu0 0.0
        %948 = vmatprep.subr.mxu0 0.0
        %949 = vmatpush1.msra.mxu0 0.0
        %950 = vmatprep.subr.mxu0 0.0
        %951 = vmatpush1.msra.mxu0 0.0
        %952 = vmatprep.subr.mxu0 0.0
        %953 = vmatpush1.msra.mxu0 0.0
        %954 = vmatprep.subr.mxu0 0.0
        %955 = vmatpush1.msra.mxu0 0.0
        %956 = vmatprep.subr.mxu0 0.0
        %957 = vmatpush1.msra.mxu0 0.0
        %958 = vmatprep.subr.mxu0 0.0
        %959 = vmatpush1.msra.mxu0 0.0
        %960 = vmatprep.subr.mxu0 0.0
        %961 = vmatpush1.msra.mxu0 0.0
        %962 = vmatprep.subr.mxu0 0.0
        %963 = vmatpush1.msra.mxu0 0.0
        %964 = vmatprep.subr.mxu0 0.0
        %965 = vmatpush1.msra.mxu0 0.0
        %966 = vmatprep.subr.mxu0 0.0
        %967 = vmatpush1.msra.mxu0 0.0
        %968 = vmatprep.subr.mxu0 0.0
        %969 = vmatpush1.msra.mxu0 0.0
        %970 = vmatprep.subr.mxu0 0.0
        %971 = vmatpush1.msra.mxu0 0.0
        %972 = vmatprep.subr.mxu0 0.0
        %973 = vmatpush1.msra.mxu0 0.0
        %974 = vmatprep.subr.mxu0 0.0
        %975 = vmatpush1.msra.mxu0 0.0
        %976 = vmatprep.subr.mxu0 0.0
        %977 = vmatpush1.msra.mxu0 0.0
        %978 = vmatprep.subr.mxu0 0.0
        %979 = vmatpush1.msra.mxu0 0.0
        %980 = vmatprep.subr.mxu0 0.0
        %981 = vmatpush1.msra.mxu0 0.0
        %982 = vmatprep.subr.mxu0 0.0
        %983 = vmatpush1.msra.mxu0 0.0
        %984 = vmatprep.subr.mxu0 0.0
        %985 = vmatpush1.msra.mxu0 0.0
        %986 = vmatprep.mubr.f32.mxu0 0.0
        %987 = vmatmul.mubr.f32.gmra.mrb[0].mxu0 %v920
        %v988 = vpop.f32.mrb[0].mxu0
        %v989 = vadd.f32 0.0, %v988
        %v990 = vpop.f32.mrb[0].mxu0
        %991 = vdwg.mxu0
        %v992 = vrcp.pop %v915
        %v993 = vmul.f32 %v989, %v992
        %995 = vrot.lane.b32.xlu0 %v993, 24
        %v996 = vpop.permute.xlu0 %995
        %vm998 = vcmask 261312
        %999 = vst.msk [vmem:[%s296] sm:$0xff] %vm998, %v996
        %s1000 = sand.u32 %s145, 1
        %s1001 = scalar_lea.sflag [#allocation6], %s1000
        %s1002 = sand.u32 %s145, 1
        %s1003 = smul.addr %s1002, 8
        %s1004 = scalar_lea.vmem [#allocation10], %s1003
        // Predicated region
        $region45: #{tpu_custom_call.1} parent=31 // pred_check
          %p1005 = pneg %p155
        $region46: #{tpu_custom_call.1} parent=31 // pred_check_branch
          %1007 = sbr.rel (%p1005) target = $region48
        $region47: #{tpu_custom_call.1} parent=31 // pred_region
          %s1009 = ssub.s32 128, 128
          %1010 = vsyncadd %s1001, %s1009
          %s1011 = sadd.s32 %s34, %s35
          %s1012 = sadd.s32 %s1011, %s33
          %s1013 = smul.addr %s1012, 128
          %s1014 = scalar_lea.hbm %s4, %s1013
          %s1016 = sshll.u32 %s1004, 4
          %s1017 = int_to_ptr.vmem [resolvable:$true] %s1016
          %1019 = dma.vmem_to_hbm [thread:$0]  %s1017, 128, %s1014, %s1001
        $region48: #{tpu_custom_call.1} parent=31 // pred_fallthru
          _
      $region32: #{tpu_custom_call.1} parent=5 // pred_fallthru
        _
      %p1020 = scmp.le.s32.totalorder 2, %s23
      // Predicated region
      $region49: #{tpu_custom_call.1} parent=5 // pred_check
        %p1021 = pneg %p1020
      $region50: #{tpu_custom_call.1} parent=5 // pred_check_branch
        %1023 = sbr.rel (%p1021) target = $region52
      $region51: #{tpu_custom_call.1} parent=5 // pred_region
        %s1024 = ssub.s32 %s23, 2
        // Predicated region
        $region53: #{tpu_custom_call.1} parent=51 // pred_check
          %p1025 = pneg %p161
        $region54: #{tpu_custom_call.1} parent=51 // pred_check_branch
          %1027 = sbr.rel (%p1025) target = $region56
        $region55: #{tpu_custom_call.1} parent=51 // pred_region
          %s1028 = sand.u32 %s146, 1
          %s1029 = scalar_lea.sflag [#allocation6], %s1028
          %s1030 = sand.u32 %s146, 1
          %s1031 = smul.addr %s1030, 8
          %s1032 = scalar_lea.vmem [#allocation10], %s1031
          %1033 = dma.done %s1029, 128
        $region56: #{tpu_custom_call.1} parent=51 // pred_fallthru
          _
      $region52: #{tpu_custom_call.1} parent=5 // pred_fallthru
        _
    $region6: #{tpu_custom_call.1} parent=1 // loop_footer
      %s27 = sadd.s32 1, %s23
    $region7: #{tpu_custom_call.1} parent=1 // loop_footer_branch
      %22 = sbr.rel target = $region3
    $region8: #{tpu_custom_call.1} parent=1 // loop_exit
      _
    %1034 = vsyncpa [#allocation5], 1
    %s1035 = scalar_lea.sflag [#allocation5], 1
    %1036 = vsyncpa %s1035, 1
    %1037 = vsyncpa [#allocation8], 1
    %s1038 = scalar_lea.sflag [#allocation8], 1
    %1039 = vsyncpa %s1038, 1
    %1040 = vsyncpa [#allocation6], 1
    %s1041 = scalar_lea.sflag [#allocation6], 1
    %1042 = vsyncpa %s1041, 1

</llo_original>
